<compile_context>
chip_gen: v7x
topology: tpu7x:2x2x1
jax: 0.10.0
libtpu: 0.0.40
codegen_flags: <defaults>
</compile_context>

<pallas_src>
import functools

import jax
import jax.numpy as jnp
from jax.experimental import pallas as pl
from jax.experimental.pallas import tpu as pltpu


def _round_up(n, m):
    return -(-n // m) * m


# ------------------------------- the kernel -------------------------------

def text_tcn_kernel(ids_ref, slab_ref, o_ref, *, T, NWp, E, H, layout):
    BT = ids_ref.shape[0]

    def wslice(name):
        off, rows, cols = layout[name]            # static Python ints
        return slab_ref[off:off + rows, 0:cols]

    # Hoisted causal masks: (t % T) >= d, so rolled taps never leak across the
    # batch boundaries of the flattened (B*T, C) activations.
    tpos = jax.lax.broadcasted_iota(jnp.int32, (BT, 1), 0) % T
    mask_d1 = tpos >= 1
    mask_d2 = tpos >= 2

    # Embedding lookup fused in-kernel: one one-hot matmul against the
    # lane-stacked [bf16-hi | lo] table, then a single VPU add of the halves.
    onehot = (ids_ref[...] ==
              jax.lax.broadcasted_iota(jnp.int32, (BT, NWp), 1)).astype(jnp.float32)
    r = jnp.dot(onehot, wslice("emb"), preferred_element_type=jnp.float32)   # (BT, 2E)
    x = r[:, 0:E] + r[:, E:2 * E]                                            # (BT, E)

    def tap_cat(h, mask, d):
        # Causal dilated tap (kernel_size=2, post-Chomp1d): [h[t-d], h[t]].
        # pltpu.roll -> XLU sublane rotate; wraparound is killed by the mask.
        tap = jnp.where(mask, pltpu.roll(h, shift=d, axis=0), 0.0)
        return jnp.concatenate([tap, h], axis=1)

    def conv(h, wname, bname, mask, d):
        return (jnp.dot(tap_cat(h, mask, d), wslice(wname),
                        preferred_element_type=jnp.float32) + wslice(bname))

    # ---- TemporalBlock 0 (dilation 1): conv1 and the 1x1 downsample residual
    # share one fused RHS; lanes [0:H] = conv1-pre, lanes [H:2H] = residual.
    r0 = (jnp.dot(tap_cat(x, mask_d1, 1), wslice("l0c1d_w"),
                  preferred_element_type=jnp.float32) + wslice("l0c1d_b"))
    h = jnp.maximum(r0[:, 0:H], 0.0)
    res = r0[:, H:2 * H]
    h = jnp.maximum(conv(h, "l0c2_w", "l0c2_b", mask_d1, 1), 0.0)
    h = jnp.maximum(h + res, 0.0)

    # ---- TemporalBlock 1 (dilation 2, identity residual) ----
    h1 = jnp.maximum(conv(h, "l1c1_w", "l1c1_b", mask_d2, 2), 0.0)
    h1 = jnp.maximum(conv(h1, "l1c2_w", "l1c2_b", mask_d2, 2), 0.0)
    h = jnp.maximum(h1 + h, 0.0)

    # ---- decoder Linear(H, 32), lane-padded to 128 for an unmasked store ----
    y = (jnp.dot(h, wslice("dec_w"), preferred_element_type=jnp.float32)
         + wslice("dec_b"))
    o_ref[...] = y.astype(o_ref.dtype)


# --------------------------- one-time weight packing ---------------------------

def _fused_tap_weight(w):
    """PyTorch Conv1d weight (Cout, Cin, 2) -> (2*Cin, Cout).
    Rows [0:Cin] multiply the (t-d) tap, rows [Cin:2*Cin] the t tap."""
    return jnp.concatenate(
        [jnp.transpose(w[:, :, 0]), jnp.transpose(w[:, :, 1])], axis=0)


def pack_text_tcn_params(params):
    """Pack the embedding table and all weights/biases into ONE (R, 128) f32
    slab (every segment starts at a multiple of 8 sublanes).  Runs once at
    init, never on the per-call path.  Returns (slab, layout, dims)."""
    emb = params["embedding"].astype(jnp.float32)
    n_words, E = int(emb.shape[0]), int(emb.shape[1])
    H = int(params["l0_c1_w"].shape[0])
    OUT = int(params["dec_w"].shape[0])
    OUT_PAD = _round_up(OUT, 128)

    # Embedding: zero-pad rows to a multiple of 8, split into bf16-hi / lo and
    # stack the halves along LANES -> (NWp, 2E).
    NWp = _round_up(n_words, 8)
    emb = jnp.pad(emb, ((0, NWp - n_words), (0, 0)))
    hi = emb.astype(jnp.bfloat16).astype(jnp.float32)
    lo = emb - hi
    emb_hilo = jnp.concatenate([hi, lo], axis=1)

    # Block 0: conv1 (tap-fused) and 1x1 downsample packed side-by-side (2E, 2H).
    c1 = _fused_tap_weight(params["l0_c1_w"])                         # (2E, H)
    dw = jnp.transpose(params["l0_d_w"][:, :, 0])                     # (E, H)
    dw = jnp.concatenate([jnp.zeros((E, H), jnp.float32), dw], axis=0)
    l0c1d_w = jnp.concatenate([c1, dw], axis=1)                       # (2E, 2H)
    l0c1d_b = jnp.concatenate([params["l0_c1_b"], params["l0_d_b"]]).reshape(1, -1)

    # Decoder: lane-pad the output dim to 128 so the kernel's store is unmasked.
    dec_w = jnp.pad(jnp.transpose(params["dec_w"]), ((0, 0), (0, OUT_PAD - OUT)))
    dec_b = jnp.pad(params["dec_b"], (0, OUT_PAD - OUT)).reshape(1, -1)

    segs = [
        ("emb", emb_hilo),
        ("l0c1d_w", l0c1d_w),
        ("l0c1d_b", l0c1d_b),
        ("l0c2_w", _fused_tap_weight(params["l0_c2_w"])),
        ("l0c2_b", params["l0_c2_b"].reshape(1, -1)),
        ("l1c1_w", _fused_tap_weight(params["l1_c1_w"])),
        ("l1c1_b", params["l1_c1_b"].reshape(1, -1)),
        ("l1c2_w", _fused_tap_weight(params["l1_c2_w"])),
        ("l1c2_b", params["l1_c2_b"].reshape(1, -1)),
        ("dec_w", dec_w),
        ("dec_b", dec_b),
    ]
    width = max(int(a.shape[1]) for _, a in segs)     # = OUT_PAD (128)
    layout = {}
    chunks = []
    off = 0
    for name, a in segs:
        a = a.astype(jnp.float32)
        rows, cols = int(a.shape[0]), int(a.shape[1])
        layout[name] = (off, rows, cols)
        prows = _round_up(rows, 8)
        chunks.append(jnp.pad(a, ((0, prows - rows), (0, width - cols))))
        off += prows
    slab = jnp.concatenate(chunks, axis=0)
    dims = dict(NWp=NWp, E=E, H=H, OUT=OUT, OUT_PAD=OUT_PAD)
    return slab, layout, dims


# ------------------------------ forward factory ------------------------------

def make_text_encoder_tcn(params):
    """Packs the weights ONCE; returns forward: (B, T) int32 ids -> ((B,T,32), 0)."""
    slab, layout, dims = pack_text_tcn_params(params)
    NWp, E, H = dims["NWp"], dims["E"], dims["H"]
    OUT, OUT_PAD = dims["OUT"], dims["OUT_PAD"]

    @jax.jit
    def forward(in_data, slab):
        B, T = in_data.shape
        BT = B * T
        # Flattened-time causal masking relies on whole sequences per row block.
        assert BT % T == 0
        ids = in_data.reshape(BT, 1).astype(jnp.int32)

        kernel = functools.partial(
            text_tcn_kernel, T=T, NWp=NWp, E=E, H=H, layout=layout)

        flops = 2 * BT * (NWp * 2 * E + 2 * E * 2 * H + 3 * (2 * H * H) + H * OUT_PAD)
        bytes_accessed = 4 * (BT + int(slab.size) + BT * OUT_PAD)

        # Single invocation, no grid: whole batch + packed slab = two operand
        # DMAs, trivially within VMEM on v5e/v6e/v7x.  For large batches add a
        # leading "parallel" row-chunk grid axis instead (see file header).
        y_pad = pl.pallas_call(
            kernel,
            out_shape=jax.ShapeDtypeStruct((BT, OUT_PAD), jnp.float32),
            cost_estimate=pl.CostEstimate(
                flops=flops, transcendentals=0, bytes_accessed=bytes_accessed),
        )(ids, slab)
        return y_pad[:, :OUT].reshape(B, T, OUT), 0

    return lambda in_data: forward(in_data, slab)


# --------------------------- deterministic params ---------------------------

def init_params(key, n_words, E, H, out_dim=32):
    ks = jax.random.split(key, 16)
    std = 0.01
    p = {
        # nn.Embedding default init ~ N(0, 1)
        "embedding": jax.random.normal(ks[0], (n_words, E), jnp.float32),
        # TemporalBlock 0: conv1 (H,E,2), conv2 (H,H,2), downsample (H,E,1)
        "l0_c1_w": std * jax.random.normal(ks[1], (H, E, 2), jnp.float32),
        "l0_c1_b": std * jax.random.normal(ks[2], (H,), jnp.float32),
        "l0_c2_w": std * jax.random.normal(ks[3], (H, H, 2), jnp.float32),
        "l0_c2_b": std * jax.random.normal(ks[4], (H,), jnp.float32),
        "l0_d_w":  std * jax.random.normal(ks[5], (H, E, 1), jnp.float32),
        "l0_d_b":  std * jax.random.normal(ks[6], (H,), jnp.float32),
        # TemporalBlock 1: conv1 (H,H,2), conv2 (H,H,2), no downsample
        "l1_c1_w": std * jax.random.normal(ks[7], (H, H, 2), jnp.float32),
        "l1_c1_b": std * jax.random.normal(ks[8], (H,), jnp.float32),
        "l1_c2_w": std * jax.random.normal(ks[9], (H, H, 2), jnp.float32),
        "l1_c2_b": std * jax.random.normal(ks[10], (H,), jnp.float32),
        # decoder: Linear(H, 32); weight ~ N(0, 0.01), bias = 0 (init_weights)
        "dec_w": std * jax.random.normal(ks[11], (out_dim, H), jnp.float32),
        "dec_b": jnp.zeros((out_dim,), jnp.float32),
    }
    return p


# ------------------------------ JAX reference ------------------------------

def _ref_conv(h, w, b, d):
    # h: (B, T, Cin), w: (Cout, Cin, 2) -- causal dilated conv, k=2, post-Chomp1d
    shifted = jnp.pad(h, ((0, 0), (d, 0), (0, 0)))[:, : h.shape[1], :]
    y = jnp.einsum("btc,oc->bto", shifted, w[:, :, 0]) + \
        jnp.einsum("btc,oc->bto", h, w[:, :, 1])
    return y + b[None, None, :]


def ref_forward(in_data, p):
    x = p["embedding"][in_data].astype(jnp.float32)
    # block 0
    h = jax.nn.relu(_ref_conv(x, p["l0_c1_w"], p["l0_c1_b"], 1))
    h = jax.nn.relu(_ref_conv(h, p["l0_c2_w"], p["l0_c2_b"], 1))
    res = jnp.einsum("btc,oc->bto", x, p["l0_d_w"][:, :, 0]) + p["l0_d_b"][None, None, :]
    h = jax.nn.relu(h + res)
    # block 1
    h1 = jax.nn.relu(_ref_conv(h, p["l1_c1_w"], p["l1_c1_b"], 2))
    h1 = jax.nn.relu(_ref_conv(h1, p["l1_c2_w"], p["l1_c2_b"], 2))
    h = jax.nn.relu(h1 + h)
    # decoder
    y = jnp.einsum("bth,oh->bto", h, p["dec_w"]) + p["dec_b"][None, None, :]
    return y, 0


# ---------------------------------- main ----------------------------------

if __name__ == "__main__":
    B, T = 2, 16
    N_WORDS, E, H, OUT = 50, 16, 32, 32

    key = jax.random.PRNGKey(0)
    k_params, k_tok = jax.random.split(key)
    params = init_params(k_params, N_WORDS, E, H, OUT)
    in_data = jax.random.randint(k_tok, (B, T), 0, N_WORDS, dtype=jnp.int32)

    # Weight/table packing happens exactly once, outside the per-call path.
    forward = make_text_encoder_tcn(params)

    y, zero = forward(in_data)
    y = jax.block_until_ready(y)

    y_ref, _ = ref_forward(in_data, params)
    assert y.shape == (B, T, OUT), y.shape
    assert zero == 0
    assert jnp.allclose(y, y_ref, rtol=1e-5, atol=2e-5), (
        "mismatch vs reference, max abs err = "
        f"{float(jnp.max(jnp.abs(y - y_ref)))}")

    print("KERNEL_OK")
</pallas_src>

<mosaic_0001>
module attributes {stable_mosaic.version = 11 : i64} {
  func.func @text_tcn_kernel(%arg0: memref<32x1xi32, #tpu.memory_space<vmem>>, %arg1: memref<352x128xf32, #tpu.memory_space<vmem>>, %arg2: memref<32x128xf32, #tpu.memory_space<vmem>>) attributes {dimension_semantics = [], scalar_prefetch = 0 : i64, scratch_operands = 0 : i64, tpu.core_type = #tpu.core_type<tc>} {
    %0 = tpu.iota {dimensions = array<i32: 0>} : vector<32x1xi32>
    %c16_i32 = arith.constant 16 : i32
    %c0_i32 = arith.constant 0 : i32
    %1 = arith.cmpi eq, %c16_i32, %c0_i32 : i32
    %c1_i32 = arith.constant 1 : i32
    %2 = arith.select %1, %c1_i32, %c16_i32 : i32
    %3 = vector.broadcast %2 : i32 to vector<32x1xi32>
    %4 = arith.remsi %0, %3 : vector<32x1xi32>
    %c0_i32_0 = arith.constant 0 : i32
    %5 = vector.broadcast %c0_i32_0 : i32 to vector<32x1xi32>
    %6 = arith.cmpi ne, %4, %5 : vector<32x1xi32>
    %c0_i32_1 = arith.constant 0 : i32
    %7 = vector.broadcast %c0_i32_1 : i32 to vector<32x1xi32>
    %8 = arith.cmpi slt, %4, %7 : vector<32x1xi32>
    %c0_i32_2 = arith.constant 0 : i32
    %9 = arith.cmpi slt, %2, %c0_i32_2 : i32
    %10 = vector.broadcast %9 : i1 to vector<32x1xi1>
    %11 = vector.broadcast %10 : vector<32x1xi1> to vector<32x1xi1>
    %12 = arith.xori %8, %11 : vector<32x1xi1>
    %13 = arith.andi %12, %6 : vector<32x1xi1>
    %14 = vector.broadcast %2 : i32 to vector<32x1xi32>
    %15 = arith.addi %4, %14 : vector<32x1xi32>
    %16 = arith.select %13, %15, %4 : vector<32x1xi1>, vector<32x1xi32>
    %c1_i32_3 = arith.constant 1 : i32
    %17 = vector.broadcast %c1_i32_3 : i32 to vector<32x1xi32>
    %18 = arith.cmpi sge, %16, %17 : vector<32x1xi32>
    %c2_i32 = arith.constant 2 : i32
    %19 = vector.broadcast %c2_i32 : i32 to vector<32x1xi32>
    %20 = arith.cmpi sge, %16, %19 : vector<32x1xi32>
    %c0 = arith.constant 0 : index
    %c0_4 = arith.constant 0 : index
    %21 = vector.load %arg0[%c0, %c0_4] : memref<32x1xi32, #tpu.memory_space<vmem>>, vector<32x1xi32>
    %22 = tpu.iota {dimensions = array<i32: 1>} : vector<32x56xi32>
    %23 = vector.broadcast %21 : vector<32x1xi32> to vector<32x56xi32>
    %24 = arith.cmpi eq, %23, %22 : vector<32x56xi32>
    %25 = arith.extui %24 : vector<32x56xi1> to vector<32x56xi32>
    %26 = arith.sitofp %25 : vector<32x56xi32> to vector<32x56xf32>
    %c0_5 = arith.constant 0 : index
    %c0_6 = arith.constant 0 : index
    %27 = vector.load %arg1[%c0_5, %c0_6] : memref<352x128xf32, #tpu.memory_space<vmem>>, vector<56x32xf32>
    %cst = arith.constant dense<0.000000e+00> : vector<32x32xf32>
    %28 = tpu.matmul %26, %27, %cst {dimension_numbers = #tpu.dot_dimension_numbers<[1], [0], [0], [1], [0, 0, 1, 1], [], []>} : vector<32x56xf32>, vector<56x32xf32>, vector<32x32xf32> -> vector<32x32xf32>
    %29 = vector.extract_strided_slice %28 {offsets = [0, 0], sizes = [32, 16], strides = [1, 1]} : vector<32x32xf32> to vector<32x16xf32>
    %30 = vector.extract_strided_slice %28 {offsets = [0, 16], sizes = [32, 16], strides = [1, 1]} : vector<32x32xf32> to vector<32x16xf32>
    %31 = arith.addf %29, %30 : vector<32x16xf32>
    %c1_i32_7 = arith.constant 1 : i32
    %32 = tpu.dynamic_rotate %31 by %c1_i32_7 dim 0 : vector<32x16xf32>, i32 -> vector<32x16xf32>
    %cst_8 = arith.constant 0.000000e+00 : f32
    %33 = vector.shape_cast %18 : vector<32x1xi1> to vector<32x1xi1>
    %34 = vector.broadcast %33 : vector<32x1xi1> to vector<32x16xi1>
    %35 = vector.broadcast %cst_8 : f32 to vector<32x16xf32>
    %36 = arith.select %34, %32, %35 : vector<32x16xi1>, vector<32x16xf32>
    %37 = tpu.concatenate %36, %31 in 1 : vector<32x16xf32>, vector<32x16xf32> -> vector<32x32xf32>
    %c56 = arith.constant 56 : index
    %c0_9 = arith.constant 0 : index
    %38 = vector.load %arg1[%c56, %c0_9] : memref<352x128xf32, #tpu.memory_space<vmem>>, vector<32x64xf32>
    %cst_10 = arith.constant dense<0.000000e+00> : vector<32x64xf32>
    %39 = tpu.matmul %37, %38, %cst_10 {dimension_numbers = #tpu.dot_dimension_numbers<[1], [0], [0], [1], [0, 0, 1, 1], [], []>} : vector<32x32xf32>, vector<32x64xf32>, vector<32x64xf32> -> vector<32x64xf32>
    %c88 = arith.constant 88 : index
    %c0_11 = arith.constant 0 : index
    %40 = vector.load %arg1[%c88, %c0_11] : memref<352x128xf32, #tpu.memory_space<vmem>>, vector<1x64xf32>
    %41 = vector.broadcast %40 : vector<1x64xf32> to vector<32x64xf32>
    %42 = arith.addf %39, %41 : vector<32x64xf32>
    %43 = vector.extract_strided_slice %42 {offsets = [0, 0], sizes = [32, 32], strides = [1, 1]} : vector<32x64xf32> to vector<32x32xf32>
    %cst_12 = arith.constant 0.000000e+00 : f32
    %44 = vector.broadcast %cst_12 : f32 to vector<32x32xf32>
    %45 = arith.maximumf %43, %44 : vector<32x32xf32>
    %46 = vector.extract_strided_slice %42 {offsets = [0, 32], sizes = [32, 32], strides = [1, 1]} : vector<32x64xf32> to vector<32x32xf32>
    %c1_i32_13 = arith.constant 1 : i32
    %47 = tpu.dynamic_rotate %45 by %c1_i32_13 dim 0 : vector<32x32xf32>, i32 -> vector<32x32xf32>
    %cst_14 = arith.constant 0.000000e+00 : f32
    %48 = vector.shape_cast %18 : vector<32x1xi1> to vector<32x1xi1>
    %49 = vector.broadcast %48 : vector<32x1xi1> to vector<32x32xi1>
    %50 = vector.broadcast %cst_14 : f32 to vector<32x32xf32>
    %51 = arith.select %49, %47, %50 : vector<32x32xi1>, vector<32x32xf32>
    %52 = tpu.concatenate %51, %45 in 1 : vector<32x32xf32>, vector<32x32xf32> -> vector<32x64xf32>
    %c96 = arith.constant 96 : index
    %c0_15 = arith.constant 0 : index
    %53 = vector.load %arg1[%c96, %c0_15] : memref<352x128xf32, #tpu.memory_space<vmem>>, vector<64x32xf32>
    %cst_16 = arith.constant dense<0.000000e+00> : vector<32x32xf32>
    %54 = tpu.matmul %52, %53, %cst_16 {dimension_numbers = #tpu.dot_dimension_numbers<[1], [0], [0], [1], [0, 0, 1, 1], [], []>} : vector<32x64xf32>, vector<64x32xf32>, vector<32x32xf32> -> vector<32x32xf32>
    %c160 = arith.constant 160 : index
    %c0_17 = arith.constant 0 : index
    %55 = vector.load %arg1[%c160, %c0_17] : memref<352x128xf32, #tpu.memory_space<vmem>>, vector<1x32xf32>
    %56 = vector.broadcast %55 : vector<1x32xf32> to vector<32x32xf32>
    %57 = arith.addf %54, %56 : vector<32x32xf32>
    %cst_18 = arith.constant 0.000000e+00 : f32
    %58 = vector.broadcast %cst_18 : f32 to vector<32x32xf32>
    %59 = arith.maximumf %57, %58 : vector<32x32xf32>
    %60 = arith.addf %59, %46 : vector<32x32xf32>
    %cst_19 = arith.constant 0.000000e+00 : f32
    %61 = vector.broadcast %cst_19 : f32 to vector<32x32xf32>
    %62 = arith.maximumf %60, %61 : vector<32x32xf32>
    %c2_i32_20 = arith.constant 2 : i32
    %63 = tpu.dynamic_rotate %62 by %c2_i32_20 dim 0 : vector<32x32xf32>, i32 -> vector<32x32xf32>
    %cst_21 = arith.constant 0.000000e+00 : f32
    %64 = vector.shape_cast %20 : vector<32x1xi1> to vector<32x1xi1>
    %65 = vector.broadcast %64 : vector<32x1xi1> to vector<32x32xi1>
    %66 = vector.broadcast %cst_21 : f32 to vector<32x32xf32>
    %67 = arith.select %65, %63, %66 : vector<32x32xi1>, vector<32x32xf32>
    %68 = tpu.concatenate %67, %62 in 1 : vector<32x32xf32>, vector<32x32xf32> -> vector<32x64xf32>
    %c168 = arith.constant 168 : index
    %c0_22 = arith.constant 0 : index
    %69 = vector.load %arg1[%c168, %c0_22] : memref<352x128xf32, #tpu.memory_space<vmem>>, vector<64x32xf32>
    %cst_23 = arith.constant dense<0.000000e+00> : vector<32x32xf32>
    %70 = tpu.matmul %68, %69, %cst_23 {dimension_numbers = #tpu.dot_dimension_numbers<[1], [0], [0], [1], [0, 0, 1, 1], [], []>} : vector<32x64xf32>, vector<64x32xf32>, vector<32x32xf32> -> vector<32x32xf32>
    %c232 = arith.constant 232 : index
    %c0_24 = arith.constant 0 : index
    %71 = vector.load %arg1[%c232, %c0_24] : memref<352x128xf32, #tpu.memory_space<vmem>>, vector<1x32xf32>
    %72 = vector.broadcast %71 : vector<1x32xf32> to vector<32x32xf32>
    %73 = arith.addf %70, %72 : vector<32x32xf32>
    %cst_25 = arith.constant 0.000000e+00 : f32
    %74 = vector.broadcast %cst_25 : f32 to vector<32x32xf32>
    %75 = arith.maximumf %73, %74 : vector<32x32xf32>
    %c2_i32_26 = arith.constant 2 : i32
    %76 = tpu.dynamic_rotate %75 by %c2_i32_26 dim 0 : vector<32x32xf32>, i32 -> vector<32x32xf32>
    %cst_27 = arith.constant 0.000000e+00 : f32
    %77 = vector.shape_cast %20 : vector<32x1xi1> to vector<32x1xi1>
    %78 = vector.broadcast %77 : vector<32x1xi1> to vector<32x32xi1>
    %79 = vector.broadcast %cst_27 : f32 to vector<32x32xf32>
    %80 = arith.select %78, %76, %79 : vector<32x32xi1>, vector<32x32xf32>
    %81 = tpu.concatenate %80, %75 in 1 : vector<32x32xf32>, vector<32x32xf32> -> vector<32x64xf32>
    %c240 = arith.constant 240 : index
    %c0_28 = arith.constant 0 : index
    %82 = vector.load %arg1[%c240, %c0_28] : memref<352x128xf32, #tpu.memory_space<vmem>>, vector<64x32xf32>
    %cst_29 = arith.constant dense<0.000000e+00> : vector<32x32xf32>
    %83 = tpu.matmul %81, %82, %cst_29 {dimension_numbers = #tpu.dot_dimension_numbers<[1], [0], [0], [1], [0, 0, 1, 1], [], []>} : vector<32x64xf32>, vector<64x32xf32>, vector<32x32xf32> -> vector<32x32xf32>
    %c304 = arith.constant 304 : index
    %c0_30 = arith.constant 0 : index
    %84 = vector.load %arg1[%c304, %c0_30] : memref<352x128xf32, #tpu.memory_space<vmem>>, vector<1x32xf32>
    %85 = vector.broadcast %84 : vector<1x32xf32> to vector<32x32xf32>
    %86 = arith.addf %83, %85 : vector<32x32xf32>
    %cst_31 = arith.constant 0.000000e+00 : f32
    %87 = vector.broadcast %cst_31 : f32 to vector<32x32xf32>
    %88 = arith.maximumf %86, %87 : vector<32x32xf32>
    %89 = arith.addf %88, %62 : vector<32x32xf32>
    %cst_32 = arith.constant 0.000000e+00 : f32
    %90 = vector.broadcast %cst_32 : f32 to vector<32x32xf32>
    %91 = arith.maximumf %89, %90 : vector<32x32xf32>
    %c312 = arith.constant 312 : index
    %c0_33 = arith.constant 0 : index
    %92 = vector.load %arg1[%c312, %c0_33] : memref<352x128xf32, #tpu.memory_space<vmem>>, vector<32x128xf32>
    %cst_34 = arith.constant dense<0.000000e+00> : vector<32x128xf32>
    %93 = tpu.matmul %91, %92, %cst_34 {dimension_numbers = #tpu.dot_dimension_numbers<[1], [0], [0], [1], [0, 0, 1, 1], [], []>} : vector<32x32xf32>, vector<32x128xf32>, vector<32x128xf32> -> vector<32x128xf32>
    %c344 = arith.constant 344 : index
    %c0_35 = arith.constant 0 : index
    %94 = vector.load %arg1[%c344, %c0_35] : memref<352x128xf32, #tpu.memory_space<vmem>>, vector<1x128xf32>
    %95 = vector.broadcast %94 : vector<1x128xf32> to vector<32x128xf32>
    %96 = arith.addf %93, %95 : vector<32x128xf32>
    %c0_36 = arith.constant 0 : index
    %c0_37 = arith.constant 0 : index
    %97 = vector.load %arg2[%c0_36, %c0_37] : memref<32x128xf32, #tpu.memory_space<vmem>>, vector<32x128xf32>
    tpu.vector_store %arg2[%c0_36, %c0_37], %96 {strides = array<i32>} : memref<32x128xf32, #tpu.memory_space<vmem>>, vector<32x128xf32>,
    return
  }
}

</mosaic_0001>

<llo_original>
// kernel: forward.1
$region0: #{forward.1}
  #allocation0 [shape = 'u32[]', space=smem, size = 0x4, offset = 0x4, fixed_abs, tag = 'smem constant byte address 0x4 - core index']
  #allocation1 [shape = 'u32[144,128]{1,0:T(1,128)}', space=vmem, size = 0x12000, scoped, tag = 'internal scratch']
  %s0 = inlined_call_operand.vmem [shape: s32[32,1], index: 0, kind: input, shape index: {}]
  %s1 = inlined_call_operand.hbm [shape: f32[352,128], index: 1, kind: input, shape index: {}]
  %s2 = inlined_call_operand.hbm [shape: f32[32,128], index: 2, kind: output, shape index: {}]
  %s3 = sld [smem:[#allocation0]]
  $region22: #{forward.1} parent=0
    _
  %s5 = ssub.s32 1, %s3
  %s6 = scalar_select 0, %s5, %s3
  $region1: #{forward.1} parent=0
    #allocation2 [shape = 'u8[180224]{0}', space=vmem, size = 0x2c000, scoped, tag = 'input window, operand 1, single buffered']
    #allocation3 [shape = 's32[1]{0}', space=sflag, size = 0x4, scoped, tag = 'scoped memory for forward.1']
    #allocation4 [shape = 's32[1]{0}', space=sflag, size = 0x4, scoped, tag = 'scoped memory for forward.1']
    #allocation5 [shape = 'u8[16384]{0}', space=vmem, size = 0x4000, scoped, tag = 'output window, operand 0, single buffered']
    %7 = vsyncpa [#allocation3], 0
    %8 = vsyncpa [#allocation4], 0
    // Predicated region
    $region2: #{forward.1} parent=1 // pred_check
      _
    $region3: #{forward.1} parent=1 // pred_check_branch
      %10 = sbr.rel (0) target = $region5
    $region4: #{forward.1} parent=1 // pred_region
      _
    $region5: #{forward.1} parent=1 // pred_fallthru
      _
    // Predicated region
    $region6: #{forward.1} parent=1 // pred_check
      _
    $region7: #{forward.1} parent=1 // pred_check_branch
      %12 = sbr.rel (0) target = $region9
    $region8: #{forward.1} parent=1 // pred_region
      %s14 = ssub.s32 5632, 5632
      %15 = vsyncadd [#allocation3], %s14
      %s16 = sshll.u32 [#allocation2], 4
      %s17 = int_to_ptr.vmem [resolvable:$true] %s16
      %22 = dma.hbm_to_vmem [thread:$0]  %s1, 5632, %s17, [#allocation3], 128, 128, 8
    $region9: #{forward.1} parent=1 // pred_fallthru
      _
    // Predicated region
    $region10: #{forward.1} parent=1 // pred_check
      _
    $region11: #{forward.1} parent=1 // pred_check_branch
      %24 = sbr.rel (0) target = $region13
    $region12: #{forward.1} parent=1 // pred_region
      %25 = dma.done [#allocation3], 5632
    $region13: #{forward.1} parent=1 // pred_fallthru
      _
    %v26 = vlaneseq
    %v27 = vshrl.u32 %v26, 7
    %v28 = vadd.s32 %v27, 8
    %v29 = vadd.s32 %v27, 16
    %v30 = vadd.s32 %v27, 24
    %vm31 = vcmp.lt.s32.totalorder %v27, 0
    %v32 = vsub.s32 0, %v27
    %v33 = vsel %vm31, %v32, %v27
    %v34 = vshrl.u32 %v33, 4
    %v35 = vand.u32 %v33, 15
    %v36 = vsub.s32 0, %v35
    %v37 = vsel %vm31, %v36, %v35
    %vm38 = vcmp.lt.s32.totalorder %v28, 0
    %v39 = vsub.s32 0, %v28
    %v40 = vsel %vm38, %v39, %v28
    %v41 = vshrl.u32 %v40, 4
    %v42 = vand.u32 %v40, 15
    %v43 = vsub.s32 0, %v42
    %v44 = vsel %vm38, %v43, %v42
    %vm45 = vcmp.lt.s32.totalorder %v29, 0
    %v46 = vsub.s32 0, %v29
    %v47 = vsel %vm45, %v46, %v29
    %v48 = vshrl.u32 %v47, 4
    %v49 = vand.u32 %v47, 15
    %v50 = vsub.s32 0, %v49
    %v51 = vsel %vm45, %v50, %v49
    %vm52 = vcmp.lt.s32.totalorder %v30, 0
    %v53 = vsub.s32 0, %v30
    %v54 = vsel %vm52, %v53, %v30
    %v55 = vshrl.u32 %v54, 4
    %v56 = vand.u32 %v54, 15
    %v57 = vsub.s32 0, %v56
    %v58 = vsel %vm52, %v57, %v56
    %vm59 = vcmp.ne.s32.totalorder %v37, 0
    %vm60 = vcmp.ne.s32.totalorder %v44, 0
    %vm61 = vcmp.ne.s32.totalorder %v51, 0
    %vm62 = vcmp.ne.s32.totalorder %v58, 0
    %vm63 = vcmp.lt.s32.totalorder %v37, 0
    %vm64 = vcmp.lt.s32.totalorder %v44, 0
    %vm65 = vcmp.lt.s32.totalorder %v51, 0
    %vm66 = vcmp.lt.s32.totalorder %v58, 0
    %vm67 = vmand %vm63, %vm59
    %vm68 = vmand %vm64, %vm60
    %vm69 = vmand %vm65, %vm61
    %vm70 = vmand %vm66, %vm62
    %v71 = vadd.s32 %v37, 16
    %v72 = vadd.s32 %v44, 16
    %v73 = vadd.s32 %v51, 16
    %v74 = vadd.s32 %v58, 16
    %v75 = vsel %vm67, %v71, %v37
    %v76 = vsel %vm68, %v72, %v44
    %v77 = vsel %vm69, %v73, %v51
    %v78 = vsel %vm70, %v74, %v58
    %vm79 = vcmp.ge.s32.totalorder %v75, 1
    %vm80 = vcmp.ge.s32.totalorder %v76, 1
    %vm81 = vcmp.ge.s32.totalorder %v77, 1
    %vm82 = vcmp.ge.s32.totalorder %v78, 1
    %vm83 = vcmp.ge.s32.totalorder %v75, 2
    %vm84 = vcmp.ge.s32.totalorder %v76, 2
    %vm85 = vcmp.ge.s32.totalorder %v77, 2
    %vm86 = vcmp.ge.s32.totalorder %v78, 2
    %v87 = vld [vmem:[%s0] sm:$0xff]
    %v88 = vld [vmem:[%s0 + $0x8] sm:$0xff]
    %v89 = vld [vmem:[%s0 + $0x10] sm:$0xff]
    %v90 = vld [vmem:[%s0 + $0x18] sm:$0xff]
    %v91 = vlaneseq
    %v92 = vand.u32 %v91, 127
    %93 = vset.pattern.permute.xlu0 0
    %94 = vperm.xlu0 %93, %v87
    %v95 = vpop.permute.xlu0 %94
    %96 = vset.pattern.permute.xlu0 0
    %97 = vperm.xlu0 %96, %v88
    %v98 = vpop.permute.xlu0 %97
    %99 = vset.pattern.permute.xlu0 0
    %100 = vperm.xlu0 %99, %v89
    %v101 = vpop.permute.xlu0 %100
    %102 = vset.pattern.permute.xlu0 0
    %103 = vperm.xlu0 %102, %v90
    %v104 = vpop.permute.xlu0 %103
    %vm105 = vcmp.eq.s32.totalorder %v95, %v92
    %vm106 = vcmp.eq.s32.totalorder %v98, %v92
    %vm107 = vcmp.eq.s32.totalorder %v101, %v92
    %vm108 = vcmp.eq.s32.totalorder %v104, %v92
    %v109 = vsel %vm105, 1, 0
    %v110 = vsel %vm106, 1, 0
    %v111 = vsel %vm107, 1, 0
    %v112 = vsel %vm108, 1, 0
    %v113 = vcvt.s32.f32 %v109
    %v114 = vcvt.s32.f32 %v110
    %v115 = vcvt.s32.f32 %v111
    %v116 = vcvt.s32.f32 %v112
    %v117 = vld [vmem:[#allocation2] sm:$0xff]
    %v118 = vld [vmem:[#allocation2 + $0x8] sm:$0xff]
    %v119 = vld [vmem:[#allocation2 + $0x10] sm:$0xff]
    %v120 = vld [vmem:[#allocation2 + $0x18] sm:$0xff]
    %v121 = vld [vmem:[#allocation2 + $0x20] sm:$0xff]
    %v122 = vld [vmem:[#allocation2 + $0x28] sm:$0xff]
    %v123 = vld [vmem:[#allocation2 + $0x30] sm:$0xff]
    %vm124 = vcmask 457728
    %v126 = vsel %vm124, %v113, 0
    %v129 = vsel %vm124, %v114, 0
    %v132 = vsel %vm124, %v115, 0
    %v135 = vsel %vm124, %v116, 0
    %137 = vmatprep.subr.mxu0 0.0
    %138 = vmatpush1.msra.mxu0 %v117
    %139 = vmatprep.subr.mxu0 0.0
    %140 = vmatpush1.msra.mxu0 %v118
    %141 = vmatprep.subr.mxu0 0.0
    %142 = vmatpush1.msra.mxu0 %v119
    %143 = vmatprep.subr.mxu0 0.0
    %144 = vmatpush1.msra.mxu0 %v120
    %145 = vmatprep.subr.mxu0 0.0
    %146 = vmatpush1.msra.mxu0 %v121
    %147 = vmatprep.subr.mxu0 0.0
    %148 = vmatpush1.msra.mxu0 %v122
    %149 = vmatprep.subr.mxu0 0.0
    %150 = vmatpush1.msra.mxu0 %v123
    %151 = vmatprep.subr.mxu0 0.0
    %152 = vmatpush1.msra.mxu0 0.0
    %153 = vmatprep.subr.mxu0 0.0
    %154 = vmatpush1.msra.mxu0 0.0
    %155 = vmatprep.subr.mxu0 0.0
    %156 = vmatpush1.msra.mxu0 0.0
    %157 = vmatprep.subr.mxu0 0.0
    %158 = vmatpush1.msra.mxu0 0.0
    %159 = vmatprep.subr.mxu0 0.0
    %160 = vmatpush1.msra.mxu0 0.0
    %161 = vmatprep.subr.mxu0 0.0
    %162 = vmatpush1.msra.mxu0 0.0
    %163 = vmatprep.subr.mxu0 0.0
    %164 = vmatpush1.msra.mxu0 0.0
    %165 = vmatprep.subr.mxu0 0.0
    %166 = vmatpush1.msra.mxu0 0.0
    %167 = vmatprep.subr.mxu0 0.0
    %168 = vmatpush1.msra.mxu0 0.0
    %169 = vmatprep.subr.mxu0 0.0
    %170 = vmatpush1.msra.mxu0 0.0
    %171 = vmatprep.subr.mxu0 0.0
    %172 = vmatpush1.msra.mxu0 0.0
    %173 = vmatprep.subr.mxu0 0.0
    %174 = vmatpush1.msra.mxu0 0.0
    %175 = vmatprep.subr.mxu0 0.0
    %176 = vmatpush1.msra.mxu0 0.0
    %177 = vmatprep.subr.mxu0 0.0
    %178 = vmatpush1.msra.mxu0 0.0
    %179 = vmatprep.subr.mxu0 0.0
    %180 = vmatpush1.msra.mxu0 0.0
    %181 = vmatprep.subr.mxu0 0.0
    %182 = vmatpush1.msra.mxu0 0.0
    %183 = vmatprep.subr.mxu0 0.0
    %184 = vmatpush1.msra.mxu0 0.0
    %185 = vmatprep.subr.mxu0 0.0
    %186 = vmatpush1.msra.mxu0 0.0
    %187 = vmatprep.subr.mxu0 0.0
    %188 = vmatpush1.msra.mxu0 0.0
    %189 = vmatprep.subr.mxu0 0.0
    %190 = vmatpush1.msra.mxu0 0.0
    %191 = vmatprep.subr.mxu0 0.0
    %192 = vmatpush1.msra.mxu0 0.0
    %193 = vmatprep.subr.mxu0 0.0
    %194 = vmatpush1.msra.mxu0 0.0
    %195 = vmatprep.subr.mxu0 0.0
    %196 = vmatpush1.msra.mxu0 0.0
    %197 = vmatprep.subr.mxu0 0.0
    %198 = vmatpush1.msra.mxu0 0.0
    %199 = vmatprep.subr.mxu0 0.0
    %200 = vmatpush1.msra.mxu0 0.0
    %201 = vmatprep.mubr.f32.mxu0 0.0
    %202 = vmatmul.mubr.f32.gmra.mrb[0].mxu0 %v126
    %v203 = vpop.f32.mrb[0].mxu0
    %v204 = vadd.f32 0.0, %v203
    %v205 = vpop.f32.mrb[0].mxu0
    %206 = vmatprep.mubr.f32.mxu0 0.0
    %207 = vmatmul.mubr.f32.gmra.mrb[0].mxu0 %v129
    %v208 = vpop.f32.mrb[0].mxu0
    %v209 = vadd.f32 0.0, %v208
    %v210 = vpop.f32.mrb[0].mxu0
    %211 = vmatprep.mubr.f32.mxu0 0.0
    %212 = vmatmul.mubr.f32.gmra.mrb[0].mxu0 %v132
    %v213 = vpop.f32.mrb[0].mxu0
    %v214 = vadd.f32 0.0, %v213
    %v215 = vpop.f32.mrb[0].mxu0
    %216 = vmatprep.mubr.f32.mxu0 0.0
    %217 = vmatmul.mubr.f32.gmra.mrb[0].mxu0 %v135
    %v218 = vpop.f32.mrb[0].mxu0
    %v219 = vadd.f32 0.0, %v218
    %v220 = vpop.f32.mrb[0].mxu0
    %221 = vdwg.mxu0
    %226 = vrot.lane.b32.xlu0 %v204, 112
    %v227 = vpop.permute.xlu0 %226
    %228 = vrot.lane.b32.xlu0 %v209, 112
    %v229 = vpop.permute.xlu0 %228
    %230 = vrot.lane.b32.xlu0 %v214, 112
    %v231 = vpop.permute.xlu0 %230
    %232 = vrot.lane.b32.xlu0 %v219, 112
    %v233 = vpop.permute.xlu0 %232
    %v238 = vadd.f32 %v204, %v227
    %v239 = vadd.f32 %v209, %v229
    %v240 = vadd.f32 %v214, %v231
    %v241 = vadd.f32 %v219, %v233
    %v242 = vrot.slane %v238, 7
    %v243 = vrot.slane %v239, 7
    %v244 = vrot.slane %v240, 7
    %v245 = vrot.slane %v241, 7
    %vm246 = vcmp.lt.s32.totalorder %v27, 1
    %v247 = vsel %vm246, %v244, %v245
    %v248 = vsel %vm246, %v243, %v244
    %v249 = vsel %vm246, %v242, %v243
    %v250 = vsel %vm246, %v245, %v242
    %v251 = vsel %vm79, 1, 0
    %v252 = vsel %vm80, 1, 0
    %v253 = vsel %vm81, 1, 0
    %v254 = vsel %vm82, 1, 0
    %vm255 = vcmp.eq.s32.totalorder %v251, 1
    %vm256 = vcmp.eq.s32.totalorder %v252, 1
    %vm257 = vcmp.eq.s32.totalorder %v253, 1
    %vm258 = vcmp.eq.s32.totalorder %v254, 1
    %v259 = vsel %vm255, %v250, 0.0
    %v260 = vsel %vm256, %v249, 0.0
    %v261 = vsel %vm257, %v248, 0.0
    %v262 = vsel %vm258, %v247, 0.0
    %267 = vrot.lane.b32.xlu0 %v238, 16
    %v268 = vpop.permute.xlu0 %267
    %269 = vrot.lane.b32.xlu0 %v239, 16
    %v270 = vpop.permute.xlu0 %269
    %271 = vrot.lane.b32.xlu0 %v240, 16
    %v272 = vpop.permute.xlu0 %271
    %273 = vrot.lane.b32.xlu0 %v241, 16
    %v274 = vpop.permute.xlu0 %273
    %vm279 = vcmask 130048
    %v280 = vsel %vm279, %v259, %v268
    %v281 = vsel %vm279, %v260, %v270
    %v282 = vsel %vm279, %v261, %v272
    %v283 = vsel %vm279, %v262, %v274
    %v284 = vld [vmem:[#allocation2 + $0x38] sm:$0xff]
    %v285 = vld [vmem:[#allocation2 + $0x40] sm:$0xff]
    %v286 = vld [vmem:[#allocation2 + $0x48] sm:$0xff]
    %v287 = vld [vmem:[#allocation2 + $0x50] sm:$0xff]
    %v288 = vld [vmem:[#allocation2 + $0x58] sm:$0x1]
    %v289 = vlaneseq
    %v290 = vshrl.u32 %v289, 7
    %v291 = vsub.s32 0, %v290
    %v292 = vrot.slane %v288, %v291
    %vm293 = vcmask 261120
    %v295 = vsel %vm293, %v280, 0
    %v298 = vsel %vm293, %v281, 0
    %v301 = vsel %vm293, %v282, 0
    %v304 = vsel %vm293, %v283, 0
    %306 = vmatprep.subr.mxu0 0.0
    %307 = vmatpush1.msra.mxu0 %v284
    %308 = vmatprep.subr.mxu0 0.0
    %309 = vmatpush1.msra.mxu0 %v285
    %310 = vmatprep.subr.mxu0 0.0
    %311 = vmatpush1.msra.mxu0 %v286
    %312 = vmatprep.subr.mxu0 0.0
    %313 = vmatpush1.msra.mxu0 %v287
    %314 = vmatprep.subr.mxu0 0.0
    %315 = vmatpush1.msra.mxu0 0.0
    %316 = vmatprep.subr.mxu0 0.0
    %317 = vmatpush1.msra.mxu0 0.0
    %318 = vmatprep.subr.mxu0 0.0
    %319 = vmatpush1.msra.mxu0 0.0
    %320 = vmatprep.subr.mxu0 0.0
    %321 = vmatpush1.msra.mxu0 0.0
    %322 = vmatprep.subr.mxu0 0.0
    %323 = vmatpush1.msra.mxu0 0.0
    %324 = vmatprep.subr.mxu0 0.0
    %325 = vmatpush1.msra.mxu0 0.0
    %326 = vmatprep.subr.mxu0 0.0
    %327 = vmatpush1.msra.mxu0 0.0
    %328 = vmatprep.subr.mxu0 0.0
    %329 = vmatpush1.msra.mxu0 0.0
    %330 = vmatprep.subr.mxu0 0.0
    %331 = vmatpush1.msra.mxu0 0.0
    %332 = vmatprep.subr.mxu0 0.0
    %333 = vmatpush1.msra.mxu0 0.0
    %334 = vmatprep.subr.mxu0 0.0
    %335 = vmatpush1.msra.mxu0 0.0
    %336 = vmatprep.subr.mxu0 0.0
    %337 = vmatpush1.msra.mxu0 0.0
    %338 = vmatprep.subr.mxu0 0.0
    %339 = vmatpush1.msra.mxu0 0.0
    %340 = vmatprep.subr.mxu0 0.0
    %341 = vmatpush1.msra.mxu0 0.0
    %342 = vmatprep.subr.mxu0 0.0
    %343 = vmatpush1.msra.mxu0 0.0
    %344 = vmatprep.subr.mxu0 0.0
    %345 = vmatpush1.msra.mxu0 0.0
    %346 = vmatprep.subr.mxu0 0.0
    %347 = vmatpush1.msra.mxu0 0.0
    %348 = vmatprep.subr.mxu0 0.0
    %349 = vmatpush1.msra.mxu0 0.0
    %350 = vmatprep.subr.mxu0 0.0
    %351 = vmatpush1.msra.mxu0 0.0
    %352 = vmatprep.subr.mxu0 0.0
    %353 = vmatpush1.msra.mxu0 0.0
    %354 = vmatprep.subr.mxu0 0.0
    %355 = vmatpush1.msra.mxu0 0.0
    %356 = vmatprep.subr.mxu0 0.0
    %357 = vmatpush1.msra.mxu0 0.0
    %358 = vmatprep.subr.mxu0 0.0
    %359 = vmatpush1.msra.mxu0 0.0
    %360 = vmatprep.subr.mxu0 0.0
    %361 = vmatpush1.msra.mxu0 0.0
    %362 = vmatprep.subr.mxu0 0.0
    %363 = vmatpush1.msra.mxu0 0.0
    %364 = vmatprep.subr.mxu0 0.0
    %365 = vmatpush1.msra.mxu0 0.0
    %366 = vmatprep.subr.mxu0 0.0
    %367 = vmatpush1.msra.mxu0 0.0
    %368 = vmatprep.subr.mxu0 0.0
    %369 = vmatpush1.msra.mxu0 0.0
    %370 = vmatprep.mubr.f32.mxu0 0.0
    %371 = vmatmul.mubr.f32.gmra.mrb[0].mxu0 %v295
    %v372 = vpop.f32.mrb[0].mxu0
    %v373 = vadd.f32 %v292, %v372
    %v374 = vpop.f32.mrb[0].mxu0
    %375 = vmatprep.mubr.f32.mxu0 0.0
    %376 = vmatmul.mubr.f32.gmra.mrb[0].mxu0 %v298
    %v377 = vpop.f32.mrb[0].mxu0
    %v378 = vadd.f32 %v292, %v377
    %v379 = vpop.f32.mrb[0].mxu0
    %380 = vmatprep.mubr.f32.mxu0 0.0
    %381 = vmatmul.mubr.f32.gmra.mrb[0].mxu0 %v301
    %v382 = vpop.f32.mrb[0].mxu0
    %v383 = vadd.f32 %v292, %v382
    %v384 = vpop.f32.mrb[0].mxu0
    %385 = vmatprep.mubr.f32.mxu0 0.0
    %386 = vmatmul.mubr.f32.gmra.mrb[0].mxu0 %v304
    %v387 = vpop.f32.mrb[0].mxu0
    %v388 = vadd.f32 %v292, %v387
    %v389 = vpop.f32.mrb[0].mxu0
    %390 = vdwg.mxu0
    %v391 = vmax.f32 %v373, 0.0
    %v392 = vmax.f32 %v378, 0.0
    %v393 = vmax.f32 %v383, 0.0
    %v394 = vmax.f32 %v388, 0.0
    %v395 = vrot.slane %v391, 7
    %v396 = vrot.slane %v392, 7
    %v397 = vrot.slane %v393, 7
    %v398 = vrot.slane %v394, 7
    %v399 = vsel %vm246, %v397, %v398
    %v400 = vsel %vm246, %v396, %v397
    %v401 = vsel %vm246, %v395, %v396
    %v402 = vsel %vm246, %v398, %v395
    %v403 = vsel %vm255, %v402, 0.0
    %v404 = vsel %vm256, %v401, 0.0
    %v405 = vsel %vm257, %v400, 0.0
    %v406 = vsel %vm258, %v399, 0.0
    %411 = vrot.lane.b32.xlu0 %v391, 32
    %v412 = vpop.permute.xlu0 %411
    %413 = vrot.lane.b32.xlu0 %v392, 32
    %v414 = vpop.permute.xlu0 %413
    %415 = vrot.lane.b32.xlu0 %v393, 32
    %v416 = vpop.permute.xlu0 %415
    %417 = vrot.lane.b32.xlu0 %v394, 32
    %v418 = vpop.permute.xlu0 %417
    %v423 = vsel %vm293, %v403, %v412
    %v424 = vsel %vm293, %v404, %v414
    %v425 = vsel %vm293, %v405, %v416
    %v426 = vsel %vm293, %v406, %v418
    %v427 = vld [vmem:[#allocation2 + $0x60] sm:$0xff]
    %v428 = vld [vmem:[#allocation2 + $0x68] sm:$0xff]
    %v429 = vld [vmem:[#allocation2 + $0x70] sm:$0xff]
    %v430 = vld [vmem:[#allocation2 + $0x78] sm:$0xff]
    %v431 = vld [vmem:[#allocation2 + $0x80] sm:$0xff]
    %v432 = vld [vmem:[#allocation2 + $0x88] sm:$0xff]
    %v433 = vld [vmem:[#allocation2 + $0x90] sm:$0xff]
    %v434 = vld [vmem:[#allocation2 + $0x98] sm:$0xff]
    %v435 = vld [vmem:[#allocation2 + $0xa0] sm:$0x1]
    %v436 = vlaneseq
    %v437 = vshrl.u32 %v436, 7
    %v438 = vsub.s32 0, %v437
    %v439 = vrot.slane %v435, %v438
    %vm440 = vcmask 523264
    %v442 = vsel %vm440, %v423, 0
    %v445 = vsel %vm440, %v424, 0
    %v448 = vsel %vm440, %v425, 0
    %v451 = vsel %vm440, %v426, 0
    %453 = vmatprep.subr.mxu0 0.0
    %454 = vmatpush1.msra.mxu0 %v427
    %455 = vmatprep.subr.mxu0 0.0
    %456 = vmatpush1.msra.mxu0 %v428
    %457 = vmatprep.subr.mxu0 0.0
    %458 = vmatpush1.msra.mxu0 %v429
    %459 = vmatprep.subr.mxu0 0.0
    %460 = vmatpush1.msra.mxu0 %v430
    %461 = vmatprep.subr.mxu0 0.0
    %462 = vmatpush1.msra.mxu0 %v431
    %463 = vmatprep.subr.mxu0 0.0
    %464 = vmatpush1.msra.mxu0 %v432
    %465 = vmatprep.subr.mxu0 0.0
    %466 = vmatpush1.msra.mxu0 %v433
    %467 = vmatprep.subr.mxu0 0.0
    %468 = vmatpush1.msra.mxu0 %v434
    %469 = vmatprep.subr.mxu0 0.0
    %470 = vmatpush1.msra.mxu0 0.0
    %471 = vmatprep.subr.mxu0 0.0
    %472 = vmatpush1.msra.mxu0 0.0
    %473 = vmatprep.subr.mxu0 0.0
    %474 = vmatpush1.msra.mxu0 0.0
    %475 = vmatprep.subr.mxu0 0.0
    %476 = vmatpush1.msra.mxu0 0.0
    %477 = vmatprep.subr.mxu0 0.0
    %478 = vmatpush1.msra.mxu0 0.0
    %479 = vmatprep.subr.mxu0 0.0
    %480 = vmatpush1.msra.mxu0 0.0
    %481 = vmatprep.subr.mxu0 0.0
    %482 = vmatpush1.msra.mxu0 0.0
    %483 = vmatprep.subr.mxu0 0.0
    %484 = vmatpush1.msra.mxu0 0.0
    %485 = vmatprep.subr.mxu0 0.0
    %486 = vmatpush1.msra.mxu0 0.0
    %487 = vmatprep.subr.mxu0 0.0
    %488 = vmatpush1.msra.mxu0 0.0
    %489 = vmatprep.subr.mxu0 0.0
    %490 = vmatpush1.msra.mxu0 0.0
    %491 = vmatprep.subr.mxu0 0.0
    %492 = vmatpush1.msra.mxu0 0.0
    %493 = vmatprep.subr.mxu0 0.0
    %494 = vmatpush1.msra.mxu0 0.0
    %495 = vmatprep.subr.mxu0 0.0
    %496 = vmatpush1.msra.mxu0 0.0
    %497 = vmatprep.subr.mxu0 0.0
    %498 = vmatpush1.msra.mxu0 0.0
    %499 = vmatprep.subr.mxu0 0.0
    %500 = vmatpush1.msra.mxu0 0.0
    %501 = vmatprep.subr.mxu0 0.0
    %502 = vmatpush1.msra.mxu0 0.0
    %503 = vmatprep.subr.mxu0 0.0
    %504 = vmatpush1.msra.mxu0 0.0
    %505 = vmatprep.subr.mxu0 0.0
    %506 = vmatpush1.msra.mxu0 0.0
    %507 = vmatprep.subr.mxu0 0.0
    %508 = vmatpush1.msra.mxu0 0.0
    %509 = vmatprep.subr.mxu0 0.0
    %510 = vmatpush1.msra.mxu0 0.0
    %511 = vmatprep.subr.mxu0 0.0
    %512 = vmatpush1.msra.mxu0 0.0
    %513 = vmatprep.subr.mxu0 0.0
    %514 = vmatpush1.msra.mxu0 0.0
    %515 = vmatprep.subr.mxu0 0.0
    %516 = vmatpush1.msra.mxu0 0.0
    %517 = vmatprep.mubr.f32.mxu0 0.0
    %518 = vmatmul.mubr.f32.gmra.mrb[0].mxu0 %v442
    %v519 = vpop.f32.mrb[0].mxu0
    %v520 = vadd.f32 %v439, %v519
    %v521 = vpop.f32.mrb[0].mxu0
    %522 = vmatprep.mubr.f32.mxu0 0.0
    %523 = vmatmul.mubr.f32.gmra.mrb[0].mxu0 %v445
    %v524 = vpop.f32.mrb[0].mxu0
    %v525 = vadd.f32 %v439, %v524
    %v526 = vpop.f32.mrb[0].mxu0
    %527 = vmatprep.mubr.f32.mxu0 0.0
    %528 = vmatmul.mubr.f32.gmra.mrb[0].mxu0 %v448
    %v529 = vpop.f32.mrb[0].mxu0
    %v530 = vadd.f32 %v439, %v529
    %v531 = vpop.f32.mrb[0].mxu0
    %532 = vmatprep.mubr.f32.mxu0 0.0
    %533 = vmatmul.mubr.f32.gmra.mrb[0].mxu0 %v451
    %v534 = vpop.f32.mrb[0].mxu0
    %v535 = vadd.f32 %v439, %v534
    %v536 = vpop.f32.mrb[0].mxu0
    %537 = vdwg.mxu0
    %v538 = vmax.f32 %v520, 0.0
    %v539 = vmax.f32 %v525, 0.0
    %v540 = vmax.f32 %v530, 0.0
    %v541 = vmax.f32 %v535, 0.0
    %546 = vrot.lane.b32.xlu0 %v373, 96
    %v547 = vpop.permute.xlu0 %546
    %548 = vrot.lane.b32.xlu0 %v378, 96
    %v549 = vpop.permute.xlu0 %548
    %550 = vrot.lane.b32.xlu0 %v383, 96
    %v551 = vpop.permute.xlu0 %550
    %552 = vrot.lane.b32.xlu0 %v388, 96
    %v553 = vpop.permute.xlu0 %552
    %v558 = vadd.f32 %v538, %v547
    %v559 = vadd.f32 %v539, %v549
    %v560 = vadd.f32 %v540, %v551
    %v561 = vadd.f32 %v541, %v553
    %v562 = vmax.f32 %v558, 0.0
    %v563 = vmax.f32 %v559, 0.0
    %v564 = vmax.f32 %v560, 0.0
    %v565 = vmax.f32 %v561, 0.0
    %v566 = vrot.slane %v562, 6
    %v567 = vrot.slane %v563, 6
    %v568 = vrot.slane %v564, 6
    %v569 = vrot.slane %v565, 6
    %vm570 = vcmp.lt.s32.totalorder %v27, 2
    %v571 = vsel %vm570, %v568, %v569
    %v572 = vsel %vm570, %v567, %v568
    %v573 = vsel %vm570, %v566, %v567
    %v574 = vsel %vm570, %v569, %v566
    %v575 = vsel %vm83, 1, 0
    %v576 = vsel %vm84, 1, 0
    %v577 = vsel %vm85, 1, 0
    %v578 = vsel %vm86, 1, 0
    %vm579 = vcmp.eq.s32.totalorder %v575, 1
    %vm580 = vcmp.eq.s32.totalorder %v576, 1
    %vm581 = vcmp.eq.s32.totalorder %v577, 1
    %vm582 = vcmp.eq.s32.totalorder %v578, 1
    %v583 = vsel %vm579, %v574, 0.0
    %v584 = vsel %vm580, %v573, 0.0
    %v585 = vsel %vm581, %v572, 0.0
    %v586 = vsel %vm582, %v571, 0.0
    %591 = vrot.lane.b32.xlu0 %v562, 32
    %v592 = vpop.permute.xlu0 %591
    %593 = vrot.lane.b32.xlu0 %v563, 32
    %v594 = vpop.permute.xlu0 %593
    %595 = vrot.lane.b32.xlu0 %v564, 32
    %v596 = vpop.permute.xlu0 %595
    %597 = vrot.lane.b32.xlu0 %v565, 32
    %v598 = vpop.permute.xlu0 %597
    %v603 = vsel %vm293, %v583, %v592
    %v604 = vsel %vm293, %v584, %v594
    %v605 = vsel %vm293, %v585, %v596
    %v606 = vsel %vm293, %v586, %v598
    %v607 = vld [vmem:[#allocation2 + $0xa8] sm:$0xff]
    %v608 = vld [vmem:[#allocation2 + $0xb0] sm:$0xff]
    %v609 = vld [vmem:[#allocation2 + $0xb8] sm:$0xff]
    %v610 = vld [vmem:[#allocation2 + $0xc0] sm:$0xff]
    %v611 = vld [vmem:[#allocation2 + $0xc8] sm:$0xff]
    %v612 = vld [vmem:[#allocation2 + $0xd0] sm:$0xff]
    %v613 = vld [vmem:[#allocation2 + $0xd8] sm:$0xff]
    %v614 = vld [vmem:[#allocation2 + $0xe0] sm:$0xff]
    %v615 = vld [vmem:[#allocation2 + $0xe8] sm:$0x1]
    %v616 = vlaneseq
    %v617 = vshrl.u32 %v616, 7
    %v618 = vsub.s32 0, %v617
    %v619 = vrot.slane %v615, %v618
    %v621 = vsel %vm440, %v603, 0
    %v624 = vsel %vm440, %v604, 0
    %v627 = vsel %vm440, %v605, 0
    %v630 = vsel %vm440, %v606, 0
    %632 = vmatprep.subr.mxu0 0.0
    %633 = vmatpush1.msra.mxu0 %v607
    %634 = vmatprep.subr.mxu0 0.0
    %635 = vmatpush1.msra.mxu0 %v608
    %636 = vmatprep.subr.mxu0 0.0
    %637 = vmatpush1.msra.mxu0 %v609
    %638 = vmatprep.subr.mxu0 0.0
    %639 = vmatpush1.msra.mxu0 %v610
    %640 = vmatprep.subr.mxu0 0.0
    %641 = vmatpush1.msra.mxu0 %v611
    %642 = vmatprep.subr.mxu0 0.0
    %643 = vmatpush1.msra.mxu0 %v612
    %644 = vmatprep.subr.mxu0 0.0
    %645 = vmatpush1.msra.mxu0 %v613
    %646 = vmatprep.subr.mxu0 0.0
    %647 = vmatpush1.msra.mxu0 %v614
    %648 = vmatprep.subr.mxu0 0.0
    %649 = vmatpush1.msra.mxu0 0.0
    %650 = vmatprep.subr.mxu0 0.0
    %651 = vmatpush1.msra.mxu0 0.0
    %652 = vmatprep.subr.mxu0 0.0
    %653 = vmatpush1.msra.mxu0 0.0
    %654 = vmatprep.subr.mxu0 0.0
    %655 = vmatpush1.msra.mxu0 0.0
    %656 = vmatprep.subr.mxu0 0.0
    %657 = vmatpush1.msra.mxu0 0.0
    %658 = vmatprep.subr.mxu0 0.0
    %659 = vmatpush1.msra.mxu0 0.0
    %660 = vmatprep.subr.mxu0 0.0
    %661 = vmatpush1.msra.mxu0 0.0
    %662 = vmatprep.subr.mxu0 0.0
    %663 = vmatpush1.msra.mxu0 0.0
    %664 = vmatprep.subr.mxu0 0.0
    %665 = vmatpush1.msra.mxu0 0.0
    %666 = vmatprep.subr.mxu0 0.0
    %667 = vmatpush1.msra.mxu0 0.0
    %668 = vmatprep.subr.mxu0 0.0
    %669 = vmatpush1.msra.mxu0 0.0
    %670 = vmatprep.subr.mxu0 0.0
    %671 = vmatpush1.msra.mxu0 0.0
    %672 = vmatprep.subr.mxu0 0.0
    %673 = vmatpush1.msra.mxu0 0.0
    %674 = vmatprep.subr.mxu0 0.0
    %675 = vmatpush1.msra.mxu0 0.0
    %676 = vmatprep.subr.mxu0 0.0
    %677 = vmatpush1.msra.mxu0 0.0
    %678 = vmatprep.subr.mxu0 0.0
    %679 = vmatpush1.msra.mxu0 0.0
    %680 = vmatprep.subr.mxu0 0.0
    %681 = vmatpush1.msra.mxu0 0.0
    %682 = vmatprep.subr.mxu0 0.0
    %683 = vmatpush1.msra.mxu0 0.0
    %684 = vmatprep.subr.mxu0 0.0
    %685 = vmatpush1.msra.mxu0 0.0
    %686 = vmatprep.subr.mxu0 0.0
    %687 = vmatpush1.msra.mxu0 0.0
    %688 = vmatprep.subr.mxu0 0.0
    %689 = vmatpush1.msra.mxu0 0.0
    %690 = vmatprep.subr.mxu0 0.0
    %691 = vmatpush1.msra.mxu0 0.0
    %692 = vmatprep.subr.mxu0 0.0
    %693 = vmatpush1.msra.mxu0 0.0
    %694 = vmatprep.subr.mxu0 0.0
    %695 = vmatpush1.msra.mxu0 0.0
    %696 = vmatprep.mubr.f32.mxu0 0.0
    %697 = vmatmul.mubr.f32.gmra.mrb[0].mxu0 %v621
    %v698 = vpop.f32.mrb[0].mxu0
    %v699 = vadd.f32 %v619, %v698
    %v700 = vpop.f32.mrb[0].mxu0
    %701 = vmatprep.mubr.f32.mxu0 0.0
    %702 = vmatmul.mubr.f32.gmra.mrb[0].mxu0 %v624
    %v703 = vpop.f32.mrb[0].mxu0
    %v704 = vadd.f32 %v619, %v703
    %v705 = vpop.f32.mrb[0].mxu0
    %706 = vmatprep.mubr.f32.mxu0 0.0
    %707 = vmatmul.mubr.f32.gmra.mrb[0].mxu0 %v627
    %v708 = vpop.f32.mrb[0].mxu0
    %v709 = vadd.f32 %v619, %v708
    %v710 = vpop.f32.mrb[0].mxu0
    %711 = vmatprep.mubr.f32.mxu0 0.0
    %712 = vmatmul.mubr.f32.gmra.mrb[0].mxu0 %v630
    %v713 = vpop.f32.mrb[0].mxu0
    %v714 = vadd.f32 %v619, %v713
    %v715 = vpop.f32.mrb[0].mxu0
    %716 = vdwg.mxu0
    %v717 = vmax.f32 %v699, 0.0
    %v718 = vmax.f32 %v704, 0.0
    %v719 = vmax.f32 %v709, 0.0
    %v720 = vmax.f32 %v714, 0.0
    %v721 = vrot.slane %v717, 6
    %v722 = vrot.slane %v718, 6
    %v723 = vrot.slane %v719, 6
    %v724 = vrot.slane %v720, 6
    %v725 = vsel %vm570, %v723, %v724
    %v726 = vsel %vm570, %v722, %v723
    %v727 = vsel %vm570, %v721, %v722
    %v728 = vsel %vm570, %v724, %v721
    %v729 = vsel %vm579, %v728, 0.0
    %v730 = vsel %vm580, %v727, 0.0
    %v731 = vsel %vm581, %v726, 0.0
    %v732 = vsel %vm582, %v725, 0.0
    %737 = vrot.lane.b32.xlu0 %v717, 32
    %v738 = vpop.permute.xlu0 %737
    %739 = vrot.lane.b32.xlu0 %v718, 32
    %v740 = vpop.permute.xlu0 %739
    %741 = vrot.lane.b32.xlu0 %v719, 32
    %v742 = vpop.permute.xlu0 %741
    %743 = vrot.lane.b32.xlu0 %v720, 32
    %v744 = vpop.permute.xlu0 %743
    %v749 = vsel %vm293, %v729, %v738
    %v750 = vsel %vm293, %v730, %v740
    %v751 = vsel %vm293, %v731, %v742
    %v752 = vsel %vm293, %v732, %v744
    %v753 = vld [vmem:[#allocation2 + $0xf0] sm:$0xff]
    %v754 = vld [vmem:[#allocation2 + $0xf8] sm:$0xff]
    %v755 = vld [vmem:[#allocation2 + $0x100] sm:$0xff]
    %v756 = vld [vmem:[#allocation2 + $0x108] sm:$0xff]
    %v757 = vld [vmem:[#allocation2 + $0x110] sm:$0xff]
    %v758 = vld [vmem:[#allocation2 + $0x118] sm:$0xff]
    %v759 = vld [vmem:[#allocation2 + $0x120] sm:$0xff]
    %v760 = vld [vmem:[#allocation2 + $0x128] sm:$0xff]
    %v761 = vld [vmem:[#allocation2 + $0x130] sm:$0x1]
    %v762 = vlaneseq
    %v763 = vshrl.u32 %v762, 7
    %v764 = vsub.s32 0, %v763
    %v765 = vrot.slane %v761, %v764
    %v767 = vsel %vm440, %v749, 0
    %v770 = vsel %vm440, %v750, 0
    %v773 = vsel %vm440, %v751, 0
    %v776 = vsel %vm440, %v752, 0
    %778 = vmatprep.subr.mxu0 0.0
    %779 = vmatpush1.msra.mxu0 %v753
    %780 = vmatprep.subr.mxu0 0.0
    %781 = vmatpush1.msra.mxu0 %v754
    %782 = vmatprep.subr.mxu0 0.0
    %783 = vmatpush1.msra.mxu0 %v755
    %784 = vmatprep.subr.mxu0 0.0
    %785 = vmatpush1.msra.mxu0 %v756
    %786 = vmatprep.subr.mxu0 0.0
    %787 = vmatpush1.msra.mxu0 %v757
    %788 = vmatprep.subr.mxu0 0.0
    %789 = vmatpush1.msra.mxu0 %v758
    %790 = vmatprep.subr.mxu0 0.0
    %791 = vmatpush1.msra.mxu0 %v759
    %792 = vmatprep.subr.mxu0 0.0
    %793 = vmatpush1.msra.mxu0 %v760
    %794 = vmatprep.subr.mxu0 0.0
    %795 = vmatpush1.msra.mxu0 0.0
    %796 = vmatprep.subr.mxu0 0.0
    %797 = vmatpush1.msra.mxu0 0.0
    %798 = vmatprep.subr.mxu0 0.0
    %799 = vmatpush1.msra.mxu0 0.0
    %800 = vmatprep.subr.mxu0 0.0
    %801 = vmatpush1.msra.mxu0 0.0
    %802 = vmatprep.subr.mxu0 0.0
    %803 = vmatpush1.msra.mxu0 0.0
    %804 = vmatprep.subr.mxu0 0.0
    %805 = vmatpush1.msra.mxu0 0.0
    %806 = vmatprep.subr.mxu0 0.0
    %807 = vmatpush1.msra.mxu0 0.0
    %808 = vmatprep.subr.mxu0 0.0
    %809 = vmatpush1.msra.mxu0 0.0
    %810 = vmatprep.subr.mxu0 0.0
    %811 = vmatpush1.msra.mxu0 0.0
    %812 = vmatprep.subr.mxu0 0.0
    %813 = vmatpush1.msra.mxu0 0.0
    %814 = vmatprep.subr.mxu0 0.0
    %815 = vmatpush1.msra.mxu0 0.0
    %816 = vmatprep.subr.mxu0 0.0
    %817 = vmatpush1.msra.mxu0 0.0
    %818 = vmatprep.subr.mxu0 0.0
    %819 = vmatpush1.msra.mxu0 0.0
    %820 = vmatprep.subr.mxu0 0.0
    %821 = vmatpush1.msra.mxu0 0.0
    %822 = vmatprep.subr.mxu0 0.0
    %823 = vmatpush1.msra.mxu0 0.0
    %824 = vmatprep.subr.mxu0 0.0
    %825 = vmatpush1.msra.mxu0 0.0
    %826 = vmatprep.subr.mxu0 0.0
    %827 = vmatpush1.msra.mxu0 0.0
    %828 = vmatprep.subr.mxu0 0.0
    %829 = vmatpush1.msra.mxu0 0.0
    %830 = vmatprep.subr.mxu0 0.0
    %831 = vmatpush1.msra.mxu0 0.0
    %832 = vmatprep.subr.mxu0 0.0
    %833 = vmatpush1.msra.mxu0 0.0
    %834 = vmatprep.subr.mxu0 0.0
    %835 = vmatpush1.msra.mxu0 0.0
    %836 = vmatprep.subr.mxu0 0.0
    %837 = vmatpush1.msra.mxu0 0.0
    %838 = vmatprep.subr.mxu0 0.0
    %839 = vmatpush1.msra.mxu0 0.0
    %840 = vmatprep.subr.mxu0 0.0
    %841 = vmatpush1.msra.mxu0 0.0
    %842 = vmatprep.mubr.f32.mxu0 0.0
    %843 = vmatmul.mubr.f32.gmra.mrb[0].mxu0 %v767
    %v844 = vpop.f32.mrb[0].mxu0
    %v845 = vadd.f32 %v765, %v844
    %v846 = vpop.f32.mrb[0].mxu0
    %847 = vmatprep.mubr.f32.mxu0 0.0
    %848 = vmatmul.mubr.f32.gmra.mrb[0].mxu0 %v770
    %v849 = vpop.f32.mrb[0].mxu0
    %v850 = vadd.f32 %v765, %v849
    %v851 = vpop.f32.mrb[0].mxu0
    %852 = vmatprep.mubr.f32.mxu0 0.0
    %853 = vmatmul.mubr.f32.gmra.mrb[0].mxu0 %v773
    %v854 = vpop.f32.mrb[0].mxu0
    %v855 = vadd.f32 %v765, %v854
    %v856 = vpop.f32.mrb[0].mxu0
    %857 = vmatprep.mubr.f32.mxu0 0.0
    %858 = vmatmul.mubr.f32.gmra.mrb[0].mxu0 %v776
    %v859 = vpop.f32.mrb[0].mxu0
    %v860 = vadd.f32 %v765, %v859
    %v861 = vpop.f32.mrb[0].mxu0
    %862 = vdwg.mxu0
    %v863 = vmax.f32 %v845, 0.0
    %v864 = vmax.f32 %v850, 0.0
    %v865 = vmax.f32 %v855, 0.0
    %v866 = vmax.f32 %v860, 0.0
    %v867 = vadd.f32 %v863, %v562
    %v868 = vadd.f32 %v864, %v563
    %v869 = vadd.f32 %v865, %v564
    %v870 = vadd.f32 %v866, %v565
    %v871 = vmax.f32 %v867, 0.0
    %v872 = vmax.f32 %v868, 0.0
    %v873 = vmax.f32 %v869, 0.0
    %v874 = vmax.f32 %v870, 0.0
    %v875 = vld [vmem:[#allocation2 + $0x138] sm:$0xff]
    %v876 = vld [vmem:[#allocation2 + $0x140] sm:$0xff]
    %v877 = vld [vmem:[#allocation2 + $0x148] sm:$0xff]
    %v878 = vld [vmem:[#allocation2 + $0x150] sm:$0xff]
    %v879 = vld [vmem:[#allocation2 + $0x158] sm:$0x1]
    %v880 = vlaneseq
    %v881 = vshrl.u32 %v880, 7
    %v882 = vsub.s32 0, %v881
    %v883 = vrot.slane %v879, %v882
    %v885 = vsel %vm293, %v871, 0
    %v888 = vsel %vm293, %v872, 0
    %v891 = vsel %vm293, %v873, 0
    %v894 = vsel %vm293, %v874, 0
    %896 = vmatprep.subr.mxu0 0.0
    %897 = vmatpush1.msra.mxu0 %v875
    %898 = vmatprep.subr.mxu0 0.0
    %899 = vmatpush1.msra.mxu0 %v876
    %900 = vmatprep.subr.mxu0 0.0
    %901 = vmatpush1.msra.mxu0 %v877
    %902 = vmatprep.subr.mxu0 0.0
    %903 = vmatpush1.msra.mxu0 %v878
    %904 = vmatprep.subr.mxu0 0.0
    %905 = vmatpush1.msra.mxu0 0.0
    %906 = vmatprep.subr.mxu0 0.0
    %907 = vmatpush1.msra.mxu0 0.0
    %908 = vmatprep.subr.mxu0 0.0
    %909 = vmatpush1.msra.mxu0 0.0
    %910 = vmatprep.subr.mxu0 0.0
    %911 = vmatpush1.msra.mxu0 0.0
    %912 = vmatprep.subr.mxu0 0.0
    %913 = vmatpush1.msra.mxu0 0.0
    %914 = vmatprep.subr.mxu0 0.0
    %915 = vmatpush1.msra.mxu0 0.0
    %916 = vmatprep.subr.mxu0 0.0
    %917 = vmatpush1.msra.mxu0 0.0
    %918 = vmatprep.subr.mxu0 0.0
    %919 = vmatpush1.msra.mxu0 0.0
    %920 = vmatprep.subr.mxu0 0.0
    %921 = vmatpush1.msra.mxu0 0.0
    %922 = vmatprep.subr.mxu0 0.0
    %923 = vmatpush1.msra.mxu0 0.0
    %924 = vmatprep.subr.mxu0 0.0
    %925 = vmatpush1.msra.mxu0 0.0
    %926 = vmatprep.subr.mxu0 0.0
    %927 = vmatpush1.msra.mxu0 0.0
    %928 = vmatprep.subr.mxu0 0.0
    %929 = vmatpush1.msra.mxu0 0.0
    %930 = vmatprep.subr.mxu0 0.0
    %931 = vmatpush1.msra.mxu0 0.0
    %932 = vmatprep.subr.mxu0 0.0
    %933 = vmatpush1.msra.mxu0 0.0
    %934 = vmatprep.subr.mxu0 0.0
    %935 = vmatpush1.msra.mxu0 0.0
    %936 = vmatprep.subr.mxu0 0.0
    %937 = vmatpush1.msra.mxu0 0.0
    %938 = vmatprep.subr.mxu0 0.0
    %939 = vmatpush1.msra.mxu0 0.0
    %940 = vmatprep.subr.mxu0 0.0
    %941 = vmatpush1.msra.mxu0 0.0
    %942 = vmatprep.subr.mxu0 0.0
    %943 = vmatpush1.msra.mxu0 0.0
    %944 = vmatprep.subr.mxu0 0.0
    %945 = vmatpush1.msra.mxu0 0.0
    %946 = vmatprep.subr.mxu0 0.0
    %947 = vmatpush1.msra.mxu0 0.0
    %948 = vmatprep.subr.mxu0 0.0
    %949 = vmatpush1.msra.mxu0 0.0
    %950 = vmatprep.subr.mxu0 0.0
    %951 = vmatpush1.msra.mxu0 0.0
    %952 = vmatprep.subr.mxu0 0.0
    %953 = vmatpush1.msra.mxu0 0.0
    %954 = vmatprep.subr.mxu0 0.0
    %955 = vmatpush1.msra.mxu0 0.0
    %956 = vmatprep.subr.mxu0 0.0
    %957 = vmatpush1.msra.mxu0 0.0
    %958 = vmatprep.subr.mxu0 0.0
    %959 = vmatpush1.msra.mxu0 0.0
    %960 = vmatprep.mubr.f32.mxu0 0.0
    %961 = vmatmul.mubr.f32.gmra.mrb[0].mxu0 %v885
    %v962 = vpop.f32.mrb[0].mxu0
    %v963 = vadd.f32 %v883, %v962
    %v964 = vpop.f32.mrb[0].mxu0
    %965 = vmatprep.mubr.f32.mxu0 0.0
    %966 = vmatmul.mubr.f32.gmra.mrb[0].mxu0 %v888
    %v967 = vpop.f32.mrb[0].mxu0
    %v968 = vadd.f32 %v883, %v967
    %v969 = vpop.f32.mrb[0].mxu0
    %970 = vmatprep.mubr.f32.mxu0 0.0
    %971 = vmatmul.mubr.f32.gmra.mrb[0].mxu0 %v891
    %v972 = vpop.f32.mrb[0].mxu0
    %v973 = vadd.f32 %v883, %v972
    %v974 = vpop.f32.mrb[0].mxu0
    %975 = vmatprep.mubr.f32.mxu0 0.0
    %976 = vmatmul.mubr.f32.gmra.mrb[0].mxu0 %v894
    %v977 = vpop.f32.mrb[0].mxu0
    %v978 = vadd.f32 %v883, %v977
    %v979 = vpop.f32.mrb[0].mxu0
    %980 = vdwg.mxu0
    %981 = vst [vmem:[#allocation5] sm:$0xff] %v963
    %982 = vst [vmem:[#allocation5 + $0x8] sm:$0xff] %v968
    %983 = vst [vmem:[#allocation5 + $0x10] sm:$0xff] %v973
    %984 = vst [vmem:[#allocation5 + $0x18] sm:$0xff] %v978
    // Predicated region
    $region14: #{forward.1} parent=1 // pred_check
      _
    $region15: #{forward.1} parent=1 // pred_check_branch
      %986 = sbr.rel (0) target = $region17
    $region16: #{forward.1} parent=1 // pred_region
      %s988 = ssub.s32 512, 512
      %989 = vsyncadd [#allocation4], %s988
      %s990 = sshll.u32 [#allocation5], 4
      %s991 = int_to_ptr.vmem [resolvable:$true] %s990
      %996 = dma.vmem_to_hbm [thread:$0]  %s991, 512, %s2, [#allocation4], 128, 128, 8
    $region17: #{forward.1} parent=1 // pred_fallthru
      _
    // Predicated region
    $region18: #{forward.1} parent=1 // pred_check
      _
    $region19: #{forward.1} parent=1 // pred_check_branch
      %998 = sbr.rel (0) target = $region21
    $region20: #{forward.1} parent=1 // pred_region
      %999 = dma.done [#allocation4], 512
    $region21: #{forward.1} parent=1 // pred_fallthru
      _
    %1000 = vsyncpa [#allocation3], 1
    %1001 = vsyncpa [#allocation4], 1

</llo_original>
